<compile_context>
chip_gen: v5e
topology: v5e:2x2
jax: 0.10.0
libtpu: 0.0.40
codegen_flags: <defaults>
</compile_context>

<pallas_src>
import jax
import jax.numpy as jnp
from jax import lax
from jax.experimental import pallas as pl
from jax.experimental.pallas import tpu as pltpu


def _pick_tile(dim, preferred, quantum=128):
    """Largest divisor of `dim` that is a multiple of `quantum` and <= `preferred`.

    Falls back to the full dim when dim <= preferred or dim is not a multiple of quantum
    (full-extent blocks are always legal w.r.t. the (8,128) constraint)."""
    if dim <= preferred or dim % quantum != 0:
        return dim
    best = quantum
    t = quantum
    while t <= preferred:
        if dim % t == 0:
            best = t
        t += quantum
    return best


# --------------------------------------------------------------------------------------
# Pallas kernel 1: fused distances + bit-packed radius/time masks + running argmin.
#   inputs : mask_aug [B, S, 3+R]  (query xyz + per-branch squared time windows, f32)
#            xyz_cf   [B, 3, N]    (point cloud, channels-first, f32; lane dim = N tile)
#   outputs: vmask  [B, S, N] int8  (bit r set <=> point inside branch r)
#            gfirst [B, 1, S] int32 (first argmin of the full 3-D squared distance, lane-dense)
#   grid   : (B, S//ts, N//tN) with the N axis as a trailing "arbitrary" reduction axis.
# --------------------------------------------------------------------------------------
def _make_group_kernel(radius_list, N):
    R = len(radius_list)

    def kernel(mask_ref, xyz_ref, vmask_ref, gfirst_ref, best_val_ref, best_idx_ref):
        ni = pl.program_id(2)
        src = mask_ref[0]                         # [tS, 3+R]  queries on sublanes
        dst = xyz_ref[0]                          # [3, tN]    cloud tile on lanes
        tS = src.shape[0]
        tN = dst.shape[1]

        # Per-coordinate VPU broadcasts; exact decomposition dist_ori = dist_xy + dist_t.
        dxy = (src[:, 0:1] - dst[0:1, :]) ** 2 + (src[:, 1:2] - dst[1:2, :]) ** 2
        dt = (src[:, 2:3] - dst[2:3, :]) ** 2
        dori = dxy + dt

        # Bit-packed per-radius validity mask (int8). PyTorch semantics preserved:
        # squared xy-distance vs *raw* radius, squared t-distance vs squared time window.
        packed = jnp.zeros((tS, tN), jnp.int32)
        for r in range(R):
            mt = src[:, 3 + r:4 + r]              # [tS, 1] per-query time threshold
            valid = (dxy <= radius_list[r]) & (dt <= mt)
            packed = packed + valid.astype(jnp.int32) * (1 << r)
        vmask_ref[0] = packed.astype(jnp.int8)

        # Running first-argmin of dori across N tiles (index carried in f32; exact N < 2^24).
        col = lax.broadcasted_iota(jnp.int32, (tS, tN), 1) + ni * tN
        colf = col.astype(jnp.float32)
        tile_min = jnp.min(dori, axis=-1, keepdims=True)
        tile_first = jnp.min(jnp.where(dori == tile_min, colf, jnp.float32(N)),
                             axis=-1, keepdims=True)

        @pl.when(ni == 0)
        def _():
            best_val_ref[...] = tile_min
            best_idx_ref[...] = tile_first

        @pl.when(ni > 0)
        def _():
            better = tile_min < best_val_ref[...]   # strict < keeps the earliest index on ties
            best_idx_ref[...] = jnp.where(better, tile_first, best_idx_ref[...])
            best_val_ref[...] = jnp.where(better, tile_min, best_val_ref[...])

        @pl.when(ni == pl.num_programs(2) - 1)
        def _():
            # Lane-dense [1, tS] store: transpose [tS,1] -> [1,tS] via diagonal-select +
            # sublane reduce (only broadcast / where / reduce ops; no degenerate transpose).
            first = best_idx_ref[...]                              # [tS, 1] f32
            rows = lax.broadcasted_iota(jnp.int32, (tS, tS), 0)
            cols = lax.broadcasted_iota(jnp.int32, (tS, tS), 1)
            diag = jnp.where(rows == cols, jnp.broadcast_to(first, (tS, tS)), 0.0)
            gfirst_ref[0] = jnp.sum(diag, axis=0, keepdims=True).astype(jnp.int32)

    return kernel


def grouping_pallas(xyz_cf, mask, maxt, radius_list):
    """xyz_cf [B,3,N], mask [B,S,3], maxt [B,R] -> (vmask [B,S,N] int8, gfirst [B,S] int32)."""
    B, _, N = xyz_cf.shape
    _, S, _ = mask.shape
    R = len(radius_list)
    assert N < (1 << 24), "argmin index is carried in f32; exact only for N < 2**24"

    ts = _pick_tile(S, 128)        # query tile (sublanes); 128 keeps v7x's 64 MiB VMEM happy
    tn = _pick_tile(N, 2048)       # cloud tile (lanes); trailing reduction axis

    # Append per-branch squared time windows as extra "channels" of the query points so the
    # kernel needs no SMEM scalar plumbing.
    mask_aug = jnp.concatenate(
        [mask.astype(jnp.float32),
         jnp.broadcast_to(maxt[:, None, :], (B, S, R)).astype(jnp.float32)], axis=-1)

    kernel = _make_group_kernel(tuple(float(r) for r in radius_list), N)
    outs = pl.pallas_call(
        kernel,
        out_shape=(jax.ShapeDtypeStruct((B, S, N), jnp.int8),
                   jax.ShapeDtypeStruct((B, 1, S), jnp.int32)),
        grid=(B, S // ts, N // tn),
        in_specs=[
            pl.BlockSpec((1, ts, 3 + R), lambda b, si, ni: (b, si, 0)),   # queries (+thresh)
            pl.BlockSpec((1, 3, tn), lambda b, si, ni: (b, 0, ni)),       # cloud tile
        ],
        out_specs=(pl.BlockSpec((1, ts, tn), lambda b, si, ni: (b, si, ni)),
                   pl.BlockSpec((1, 1, ts), lambda b, si, ni: (b, 0, si))),
        scratch_shapes=[pltpu.VMEM((ts, 1), jnp.float32),     # running min value
                        pltpu.VMEM((ts, 1), jnp.float32)],    # running first index (f32)
        compiler_params=pltpu.CompilerParams(
            dimension_semantics=("parallel", "parallel", "arbitrary")),
    )(mask_aug, xyz_cf)
    return outs[0], outs[1][:, 0, :]


def grouping_ref(xyz_cf, mask, maxt, radius_list):
    """Pure-JAX reference of the fused grouping-prep stage (same math / same outputs)."""
    sx = mask[:, :, 0:1]
    sy = mask[:, :, 1:2]
    st = mask[:, :, 2:3]
    dx = xyz_cf[:, 0, :][:, None, :]
    dy = xyz_cf[:, 1, :][:, None, :]
    dz = xyz_cf[:, 2, :][:, None, :]
    dxy = (sx - dx) ** 2 + (sy - dy) ** 2
    dt = (st - dz) ** 2
    dori = dxy + dt
    gfirst = jnp.argmin(dori, axis=-1).astype(jnp.int32)
    packed = jnp.zeros(dxy.shape, jnp.int32)
    for r, radius in enumerate(radius_list):
        mt = maxt[:, r][:, None, None]
        valid = (dxy <= radius) & (dt <= mt)
        packed = packed + valid.astype(jnp.int32) * (1 << r)
    return packed.astype(jnp.int8), gfirst


# --------------------------------------------------------------------------------------
# Pallas kernel 2: fused per-point MLP (1x1 conv + folded BN + ReLU chain) + max over K.
# grouped is [B, K, Cin, S] bf16; grid = (B, S_tiles, K) with K innermost ("arbitrary");
# an f32 [Cout_last, tS] max-accumulator lives in VMEM scratch; output is [B, Cout_last, S].
# --------------------------------------------------------------------------------------
def _make_mlp_kernel(L):
    def kernel(*refs):
        x_ref = refs[0]
        w_refs = refs[1:1 + L]
        b_refs = refs[1 + L:1 + 2 * L]
        o_ref = refs[1 + 2 * L]
        acc_ref = refs[2 + 2 * L]

        k = pl.program_id(2)
        x = x_ref[0, 0]                                            # [Cin, tS] bf16
        act = None
        for j in range(L):
            y = jnp.dot(w_refs[j][...], x,                         # bf16 x bf16 -> f32 acc
                        preferred_element_type=jnp.float32)
            act = jnp.maximum(y + b_refs[j][...], 0.0)             # bias + ReLU in f32
            x = act.astype(jnp.bfloat16)                           # bf16 operand for next layer

        @pl.when(k == 0)
        def _():
            acc_ref[...] = act

        @pl.when(k > 0)
        def _():
            acc_ref[...] = jnp.maximum(acc_ref[...], act)

        @pl.when(k == pl.num_programs(2) - 1)
        def _():
            o_ref[0] = acc_ref[...]                                # lane-dense [Cout_last, tS]

    return kernel


def mlp_relu_max_pallas(grouped, weights, biases):
    """grouped [B, K, Cin, S] bf16 -> [B, Cout_last, S] f32 = max_k relu(bn(conv(...)))."""
    B, K, Cin, S = grouped.shape
    L = len(weights)
    c_out = weights[-1].shape[0]
    tS = _pick_tile(S, 512)   # matmul lane extent per step; multiple of 128 (or full S)

    in_specs = [pl.BlockSpec((1, 1, Cin, tS), lambda b, si, k: (b, k, 0, si))]
    for w in weights:
        in_specs.append(pl.BlockSpec(w.shape, lambda b, si, k: (0, 0)))
    for bb in biases:
        in_specs.append(pl.BlockSpec(bb.shape, lambda b, si, k: (0, 0)))

    return pl.pallas_call(
        _make_mlp_kernel(L),
        out_shape=jax.ShapeDtypeStruct((B, c_out, S), jnp.float32),
        grid=(B, S // tS, K),
        in_specs=in_specs,
        out_specs=pl.BlockSpec((1, c_out, tS), lambda b, si, k: (b, 0, si)),
        scratch_shapes=[pltpu.VMEM((c_out, tS), jnp.float32)],
        compiler_params=pltpu.CompilerParams(
            dimension_semantics=("parallel", "parallel", "arbitrary")),
    )(grouped, *weights, *biases)


# --------------------------------------------------------------------------------------
# Module wrapper (selection / gather glue is data-dependent and stays in XLA).
# --------------------------------------------------------------------------------------
class PointNetSetAbstractionMsgPallas:
    def __init__(self, radius_list, nsample_list, in_channel, mlp_list, key):
        self.radius_list = radius_list
        self.nsample_list = nsample_list
        self.params = []      # per branch: list of (W_eff bf16 [Cout,Cin], b_eff f32 [Cout,1])
        eps = 1e-5            # nn.BatchNorm2d default eps
        for mlp in mlp_list:
            layers = []
            last = in_channel
            for out_c in mlp:
                key, k1, k2, k3, k4, k5, k6 = jax.random.split(key, 7)
                W = 0.1 * jax.random.normal(k1, (out_c, last), jnp.float32)   # Conv2d 1x1 weight
                b = 0.05 * jax.random.normal(k2, (out_c,), jnp.float32)       # Conv2d bias
                gamma = 1.0 + 0.1 * jax.random.normal(k3, (out_c,), jnp.float32)
                beta = 0.05 * jax.random.normal(k4, (out_c,), jnp.float32)
                r_mean = 0.05 * jax.random.normal(k5, (out_c,), jnp.float32)
                r_var = 1.0 + 0.1 * jnp.abs(jax.random.normal(k6, (out_c,), jnp.float32))
                # Fold eval-mode BatchNorm into the 1x1 conv.
                scale = gamma / jnp.sqrt(r_var + eps)
                W_eff = (W * scale[:, None]).astype(jnp.bfloat16)     # [Cout, Cin]  bf16
                b_eff = ((b - r_mean) * scale + beta)[:, None]        # [Cout, 1]    f32
                layers.append((W_eff, b_eff))
                last = out_c
            self.params.append(layers)

    def __call__(self, xyz, points, mask, t_list, use_pallas=True):
        B, N, _ = xyz.shape
        _, S, _ = mask.shape
        R = len(self.radius_list)

        # Per-branch squared time windows (branch r uses the (2r)-th largest window).
        d = t_list[:, 1:] - t_list[:, :-1]                            # [B, 6]
        t = d[:, :-1] + d[:, 1:]                                      # [B, 5]
        t_desc = jnp.sort(t, axis=-1)[:, ::-1]
        maxt = jnp.stack([t_desc[:, 2 * r] ** 2 for r in range(R)], axis=-1)   # [B, R]

        xyz_cf = jnp.transpose(xyz, (0, 2, 1))                        # [B, 3, N]
        pts_cf = None if points is None else jnp.transpose(points, (0, 2, 1))  # [B, D, N]
        mask_cf = jnp.transpose(mask, (0, 2, 1))                      # [B, 3, S]

        # Distances + bit-packed masking + argmin: computed ONCE, shared by all branches.
        if use_pallas:
            vmask, gfirst = grouping_pallas(xyz_cf, mask, maxt, self.radius_list)
        else:
            vmask, gfirst = grouping_ref(xyz_cf, mask, maxt, self.radius_list)
        vmask_i32 = vmask.astype(jnp.int32)
        iota_n = jnp.arange(N, dtype=jnp.int32)[None, None, :]

        new_points_list = []
        for i in range(R):
            K = self.nsample_list[i]
            # Reconstruct where(valid, iota, N) and pick the K smallest valid indices in
            # ascending order via top_k (== sort()[:, :, :K] of the PyTorch original).
            valid = (vmask_i32 & (1 << i)) > 0
            midx = jnp.where(valid, iota_n, N)
            gidx = -lax.top_k(-midx, K)[0]                                     # [B, S, K]
            gidx = jnp.where(gidx == N, gfirst[:, :, None], gidx)

            # Gather channels-first, k-major -> [B, K, C, S] (matches the MLP kernel layout).
            # TODO(synk): fuse this gather into the MLP kernel (scalar-prefetched gidx + manual
            # DMA) to remove the K x-expanded HBM round-trip.
            flat = jnp.transpose(gidx, (0, 2, 1)).reshape(B, K * S)            # [B, K*S]
            idx3 = jnp.broadcast_to(flat[:, None, :], (B, 3, K * S))
            g_xyz = jnp.take_along_axis(xyz_cf, idx3, axis=2).reshape(B, 3, K, S)
            g_xyz = jnp.transpose(g_xyz, (0, 2, 1, 3)) - mask_cf[:, None, :, :]
            if pts_cf is not None:
                Dch = pts_cf.shape[1]
                idxd = jnp.broadcast_to(flat[:, None, :], (B, Dch, K * S))
                g_pts = jnp.take_along_axis(pts_cf, idxd, axis=2).reshape(B, Dch, K, S)
                g_pts = jnp.transpose(g_pts, (0, 2, 1, 3))
                grouped = jnp.concatenate([g_pts, g_xyz], axis=2)              # [B, K, D+3, S]
            else:
                grouped = g_xyz
            grouped = grouped.astype(jnp.bfloat16)

            Ws = [w for (w, _) in self.params[i]]
            bs = [b for (_, b) in self.params[i]]
            if use_pallas:
                feat = mlp_relu_max_pallas(grouped, Ws, bs)                    # [B, Cout, S]
            else:
                x = grouped
                act = None
                for w, bb in zip(Ws, bs):
                    y = jnp.einsum("oc,bkcs->bkos", w, x,
                                   preferred_element_type=jnp.float32)
                    act = jnp.maximum(y + bb[None, None, :, :], 0.0)
                    x = act.astype(jnp.bfloat16)
                feat = jnp.max(act, axis=1)
            new_points_list.append(feat)

        new_xyz = mask_cf                                                      # [B, 3, S]
        new_points_concat = jnp.concatenate(new_points_list, axis=1)          # [B, sum(Cout), S]
        return new_xyz, new_points_concat


if __name__ == "__main__":
    # Small, module-consistent shapes.
    B, N, S, D = 2, 16, 8, 4
    radius_list = [2.0, 4.0]
    nsample_list = [4, 8]
    mlp_list = [[8, 16], [16, 32]]
    in_channel = D + 3   # grouped features are concat([points (D), relative xyz (3)])

    key = jax.random.PRNGKey(0)
    k_xyz, k_pts, k_mask, k_t, k_params = jax.random.split(key, 5)
    xyz = jax.random.normal(k_xyz, (B, N, 3), jnp.float32)       # [B, N, 3]
    points = jax.random.normal(k_pts, (B, N, D), jnp.float32)    # [B, N, D]
    mask = jax.random.normal(k_mask, (B, S, 3), jnp.float32)     # [B, S, 3] query centers
    t_list = jnp.cumsum(
        0.1 + jnp.abs(jax.random.normal(k_t, (B, 7), jnp.float32)), axis=1)  # [B, 7] increasing

    module = PointNetSetAbstractionMsgPallas(
        radius_list, nsample_list, in_channel, mlp_list, k_params)

    new_xyz, new_points = module(xyz, points, mask, t_list, use_pallas=True)
    jax.block_until_ready((new_xyz, new_points))

    # Pure-JAX reference check (same selection/gather glue, reference grouping / matmul / max).
    ref_xyz, ref_points = module(xyz, points, mask, t_list, use_pallas=False)
    assert new_xyz.shape == (B, 3, S)
    assert new_points.shape == (B, sum(m[-1] for m in mlp_list), S)
    assert jnp.allclose(new_xyz, ref_xyz)
    # bf16 operands with f32 accumulation in both paths -> tolerance reflects bf16 rounding only.
    assert jnp.allclose(new_points, ref_points, atol=5e-3, rtol=5e-3), (
        float(jnp.max(jnp.abs(new_points - ref_points))))

    print("KERNEL_OK")
</pallas_src>

<mosaic_0001>
module attributes {stable_mosaic.version = 11 : i64} {
  func.func @kernel(%arg0: i32, %arg1: i32, %arg2: i32, %arg3: memref<1x8x5xf32, #tpu.memory_space<vmem>>, %arg4: memref<1x3x16xf32, #tpu.memory_space<vmem>>, %arg5: memref<1x8x16xi8, #tpu.memory_space<vmem>>, %arg6: memref<1x1x8xi32, #tpu.memory_space<vmem>>, %arg7: memref<8x1xf32, #tpu.memory_space<vmem>>, %arg8: memref<8x1xf32, #tpu.memory_space<vmem>>) attributes {dimension_semantics = [#tpu.dimension_semantics<parallel>, #tpu.dimension_semantics<parallel>, #tpu.dimension_semantics<arbitrary>], iteration_bounds = array<i64: 2, 1, 1>, scalar_prefetch = 0 : i64, scratch_operands = 2 : i64, tpu.core_type = #tpu.core_type<tc>, window_params = [{transform_indices = @transform_0, window_bounds = array<i64: 1, 8, 5>}, {transform_indices = @transform_1, window_bounds = array<i64: 1, 3, 16>}, {transform_indices = @transform_2, window_bounds = array<i64: 1, 8, 16>}, {transform_indices = @transform_3, window_bounds = array<i64: 1, 1, 8>}]} {
    %c0 = arith.constant 0 : index
    %c0_0 = arith.constant 0 : index
    %c0_1 = arith.constant 0 : index
    %0 = vector.load %arg3[%c0, %c0_0, %c0_1] : memref<1x8x5xf32, #tpu.memory_space<vmem>>, vector<1x8x5xf32>
    %1 = vector.shape_cast %0 : vector<1x8x5xf32> to vector<8x5xf32>
    %c0_2 = arith.constant 0 : index
    %c0_3 = arith.constant 0 : index
    %c0_4 = arith.constant 0 : index
    %2 = vector.load %arg4[%c0_2, %c0_3, %c0_4] : memref<1x3x16xf32, #tpu.memory_space<vmem>>, vector<1x3x16xf32>
    %3 = vector.shape_cast %2 : vector<1x3x16xf32> to vector<3x16xf32>
    %4 = vector.extract_strided_slice %1 {offsets = [0, 0], sizes = [8, 1], strides = [1, 1]} : vector<8x5xf32> to vector<8x1xf32>
    %5 = vector.extract_strided_slice %3 {offsets = [0, 0], sizes = [1, 16], strides = [1, 1]} : vector<3x16xf32> to vector<1x16xf32>
    %6 = vector.broadcast %4 : vector<8x1xf32> to vector<8x16xf32>
    %7 = vector.broadcast %5 : vector<1x16xf32> to vector<8x16xf32>
    %8 = arith.subf %6, %7 : vector<8x16xf32>
    %9 = arith.mulf %8, %8 : vector<8x16xf32>
    %10 = vector.extract_strided_slice %1 {offsets = [0, 1], sizes = [8, 1], strides = [1, 1]} : vector<8x5xf32> to vector<8x1xf32>
    %11 = vector.extract_strided_slice %3 {offsets = [1, 0], sizes = [1, 16], strides = [1, 1]} : vector<3x16xf32> to vector<1x16xf32>
    %12 = vector.broadcast %10 : vector<8x1xf32> to vector<8x16xf32>
    %13 = vector.broadcast %11 : vector<1x16xf32> to vector<8x16xf32>
    %14 = arith.subf %12, %13 : vector<8x16xf32>
    %15 = arith.mulf %14, %14 : vector<8x16xf32>
    %16 = arith.addf %9, %15 : vector<8x16xf32>
    %17 = vector.extract_strided_slice %1 {offsets = [0, 2], sizes = [8, 1], strides = [1, 1]} : vector<8x5xf32> to vector<8x1xf32>
    %18 = vector.extract_strided_slice %3 {offsets = [2, 0], sizes = [1, 16], strides = [1, 1]} : vector<3x16xf32> to vector<1x16xf32>
    %19 = vector.broadcast %17 : vector<8x1xf32> to vector<8x16xf32>
    %20 = vector.broadcast %18 : vector<1x16xf32> to vector<8x16xf32>
    %21 = arith.subf %19, %20 : vector<8x16xf32>
    %22 = arith.mulf %21, %21 : vector<8x16xf32>
    %23 = arith.addf %16, %22 : vector<8x16xf32>
    %c0_i32 = arith.constant 0 : i32
    %24 = vector.broadcast %c0_i32 : i32 to vector<8x16xi32>
    %25 = vector.extract_strided_slice %1 {offsets = [0, 3], sizes = [8, 1], strides = [1, 1]} : vector<8x5xf32> to vector<8x1xf32>
    %cst = arith.constant 2.000000e+00 : f32
    %26 = vector.broadcast %cst : f32 to vector<8x16xf32>
    %27 = arith.cmpf ole, %16, %26 : vector<8x16xf32>
    %28 = vector.broadcast %25 : vector<8x1xf32> to vector<8x16xf32>
    %29 = arith.cmpf ole, %22, %28 : vector<8x16xf32>
    %30 = arith.andi %27, %29 : vector<8x16xi1>
    %31 = arith.extui %30 : vector<8x16xi1> to vector<8x16xi32>
    %c1_i32 = arith.constant 1 : i32
    %32 = vector.broadcast %c1_i32 : i32 to vector<8x16xi32>
    %33 = arith.muli %31, %32 : vector<8x16xi32>
    %34 = arith.addi %24, %33 : vector<8x16xi32>
    %35 = vector.extract_strided_slice %1 {offsets = [0, 4], sizes = [8, 1], strides = [1, 1]} : vector<8x5xf32> to vector<8x1xf32>
    %cst_5 = arith.constant 4.000000e+00 : f32
    %36 = vector.broadcast %cst_5 : f32 to vector<8x16xf32>
    %37 = arith.cmpf ole, %16, %36 : vector<8x16xf32>
    %38 = vector.broadcast %35 : vector<8x1xf32> to vector<8x16xf32>
    %39 = arith.cmpf ole, %22, %38 : vector<8x16xf32>
    %40 = arith.andi %37, %39 : vector<8x16xi1>
    %41 = arith.extui %40 : vector<8x16xi1> to vector<8x16xi32>
    %c2_i32 = arith.constant 2 : i32
    %42 = vector.broadcast %c2_i32 : i32 to vector<8x16xi32>
    %43 = arith.muli %41, %42 : vector<8x16xi32>
    %44 = arith.addi %34, %43 : vector<8x16xi32>
    %45 = arith.trunci %44 : vector<8x16xi32> to vector<8x16xi8>
    %c0_6 = arith.constant 0 : index
    %c0_7 = arith.constant 0 : index
    %c0_8 = arith.constant 0 : index
    %46 = vector.load %arg5[%c0_6, %c0_7, %c0_8] : memref<1x8x16xi8, #tpu.memory_space<vmem>>, vector<1x8x16xi8>
    %47 = vector.shape_cast %46 : vector<1x8x16xi8> to vector<8x16xi8>
    %48 = vector.shape_cast %45 : vector<8x16xi8> to vector<1x8x16xi8>
    tpu.vector_store %arg5[%c0_6, %c0_7, %c0_8], %48 {strides = array<i32>} : memref<1x8x16xi8, #tpu.memory_space<vmem>>, vector<1x8x16xi8>,
    %49 = tpu.iota {dimensions = array<i32: 1>} : vector<8x16xi32>
    %c16_i32 = arith.constant 16 : i32
    %50 = arith.muli %arg2, %c16_i32 : i32
    %51 = vector.broadcast %50 : i32 to vector<8x16xi32>
    %52 = arith.addi %49, %51 : vector<8x16xi32>
    %53 = arith.sitofp %52 : vector<8x16xi32> to vector<8x16xf32>
    %cst_9 = arith.constant dense<0x7F800000> : vector<8xf32>
    %54 = vector.multi_reduction <minimumf>, %23, %cst_9 [1] : vector<8x16xf32> to vector<8xf32>
    %55 = vector.shape_cast %54 : vector<8xf32> to vector<8x1xf32>
    %56 = vector.broadcast %55 : vector<8x1xf32> to vector<8x16xf32>
    %57 = arith.cmpf oeq, %23, %56 : vector<8x16xf32>
    %cst_10 = arith.constant 1.600000e+01 : f32
    %58 = vector.broadcast %cst_10 : f32 to vector<8x16xf32>
    %59 = arith.select %57, %53, %58 : vector<8x16xi1>, vector<8x16xf32>
    %cst_11 = arith.constant dense<0x7F800000> : vector<8xf32>
    %60 = vector.multi_reduction <minimumf>, %59, %cst_11 [1] : vector<8x16xf32> to vector<8xf32>
    %61 = vector.shape_cast %60 : vector<8xf32> to vector<8x1xf32>
    %c0_i32_12 = arith.constant 0 : i32
    %62 = arith.cmpi eq, %arg2, %c0_i32_12 : i32
    %63 = arith.extui %62 : i1 to i32
    %c0_i32_13 = arith.constant 0 : i32
    %64 = arith.cmpi ne, %63, %c0_i32_13 : i32
    scf.if %64 {
      %c0_18 = arith.constant 0 : index
      %c0_19 = arith.constant 0 : index
      %71 = vector.load %arg7[%c0_18, %c0_19] : memref<8x1xf32, #tpu.memory_space<vmem>>, vector<8x1xf32>
      tpu.vector_store %arg7[%c0_18, %c0_19], %55 {strides = array<i32>} : memref<8x1xf32, #tpu.memory_space<vmem>>, vector<8x1xf32>,
      %c0_20 = arith.constant 0 : index
      %c0_21 = arith.constant 0 : index
      %72 = vector.load %arg8[%c0_20, %c0_21] : memref<8x1xf32, #tpu.memory_space<vmem>>, vector<8x1xf32>
      tpu.vector_store %arg8[%c0_20, %c0_21], %61 {strides = array<i32>} : memref<8x1xf32, #tpu.memory_space<vmem>>, vector<8x1xf32>,
    } else {
    }
    %c0_i32_14 = arith.constant 0 : i32
    %65 = arith.cmpi sgt, %arg2, %c0_i32_14 : i32
    %66 = arith.extui %65 : i1 to i32
    %c0_i32_15 = arith.constant 0 : i32
    %67 = arith.cmpi ne, %66, %c0_i32_15 : i32
    scf.if %67 {
      %c0_18 = arith.constant 0 : index
      %c0_19 = arith.constant 0 : index
      %71 = vector.load %arg7[%c0_18, %c0_19] : memref<8x1xf32, #tpu.memory_space<vmem>>, vector<8x1xf32>
      %72 = arith.cmpf olt, %55, %71 : vector<8x1xf32>
      %c0_20 = arith.constant 0 : index
      %c0_21 = arith.constant 0 : index
      %73 = vector.load %arg8[%c0_20, %c0_21] : memref<8x1xf32, #tpu.memory_space<vmem>>, vector<8x1xf32>
      %74 = arith.select %72, %61, %73 : vector<8x1xi1>, vector<8x1xf32>
      %c0_22 = arith.constant 0 : index
      %c0_23 = arith.constant 0 : index
      %75 = vector.load %arg8[%c0_22, %c0_23] : memref<8x1xf32, #tpu.memory_space<vmem>>, vector<8x1xf32>
      tpu.vector_store %arg8[%c0_22, %c0_23], %74 {strides = array<i32>} : memref<8x1xf32, #tpu.memory_space<vmem>>, vector<8x1xf32>,
      %c0_24 = arith.constant 0 : index
      %c0_25 = arith.constant 0 : index
      %76 = vector.load %arg7[%c0_24, %c0_25] : memref<8x1xf32, #tpu.memory_space<vmem>>, vector<8x1xf32>
      %77 = arith.select %72, %55, %76 : vector<8x1xi1>, vector<8x1xf32>
      %c0_26 = arith.constant 0 : index
      %c0_27 = arith.constant 0 : index
      %78 = vector.load %arg7[%c0_26, %c0_27] : memref<8x1xf32, #tpu.memory_space<vmem>>, vector<8x1xf32>
      tpu.vector_store %arg7[%c0_26, %c0_27], %77 {strides = array<i32>} : memref<8x1xf32, #tpu.memory_space<vmem>>, vector<8x1xf32>,
    } else {
    }
    %c0_i32_16 = arith.constant 0 : i32
    %68 = arith.cmpi eq, %arg2, %c0_i32_16 : i32
    %69 = arith.extui %68 : i1 to i32
    %c0_i32_17 = arith.constant 0 : i32
    %70 = arith.cmpi ne, %69, %c0_i32_17 : i32
    scf.if %70 {
      %c0_18 = arith.constant 0 : index
      %c0_19 = arith.constant 0 : index
      %71 = vector.load %arg8[%c0_18, %c0_19] : memref<8x1xf32, #tpu.memory_space<vmem>>, vector<8x1xf32>
      %72 = tpu.iota {dimensions = array<i32: 0>} : vector<8x8xi32>
      %73 = tpu.iota {dimensions = array<i32: 1>} : vector<8x8xi32>
      %74 = arith.cmpi eq, %72, %73 : vector<8x8xi32>
      %75 = vector.shape_cast %71 : vector<8x1xf32> to vector<8x1xf32>
      %76 = vector.broadcast %75 : vector<8x1xf32> to vector<8x8xf32>
      %cst_20 = arith.constant 0.000000e+00 : f32
      %77 = vector.broadcast %cst_20 : f32 to vector<8x8xf32>
      %78 = arith.select %74, %76, %77 : vector<8x8xi1>, vector<8x8xf32>
      %cst_21 = arith.constant dense<0.000000e+00> : vector<8xf32>
      %79 = vector.multi_reduction <add>, %78, %cst_21 [0] : vector<8x8xf32> to vector<8xf32>
      %80 = vector.shape_cast %79 : vector<8xf32> to vector<1x8xf32>
      %81 = arith.fptosi %80 : vector<1x8xf32> to vector<1x8xi32>
      %c0_22 = arith.constant 0 : index
      %c0_23 = arith.constant 0 : index
      %c0_24 = arith.constant 0 : index
      %82 = vector.load %arg6[%c0_22, %c0_23, %c0_24] : memref<1x1x8xi32, #tpu.memory_space<vmem>>, vector<1x1x8xi32>
      %83 = vector.shape_cast %82 : vector<1x1x8xi32> to vector<1x8xi32>
      %84 = vector.shape_cast %81 : vector<1x8xi32> to vector<1x1x8xi32>
      tpu.vector_store %arg6[%c0_22, %c0_23, %c0_24], %84 {strides = array<i32>} : memref<1x1x8xi32, #tpu.memory_space<vmem>>, vector<1x1x8xi32>,
    } else {
    }
    return
  }
  func.func @transform_0(%arg0: i32, %arg1: i32, %arg2: i32) -> (i32, i32, i32) {
    %c0_i32 = arith.constant 0 : i32
    %c0_i32_0 = arith.constant 0 : i32
    return %arg0, %arg1, %c0_i32 : i32, i32, i32
  }
  func.func @transform_1(%arg0: i32, %arg1: i32, %arg2: i32) -> (i32, i32, i32) {
    %c0_i32 = arith.constant 0 : i32
    %c0_i32_0 = arith.constant 0 : i32
    return %arg0, %c0_i32, %arg2 : i32, i32, i32
  }
  func.func @transform_2(%arg0: i32, %arg1: i32, %arg2: i32) -> (i32, i32, i32) {
    %c0_i32 = arith.constant 0 : i32
    return %arg0, %arg1, %arg2 : i32, i32, i32
  }
  func.func @transform_3(%arg0: i32, %arg1: i32, %arg2: i32) -> (i32, i32, i32) {
    %c0_i32 = arith.constant 0 : i32
    %c0_i32_0 = arith.constant 0 : i32
    return %arg0, %c0_i32, %arg1 : i32, i32, i32
  }
}

</mosaic_0001>

<llo_original>
// kernel: tpu_custom_call.1
$region0: #{tpu_custom_call.1}
  #allocation0 [shape = 'u32[]', space=smem, size = 0x4, offset = 0x4, fixed_abs, tag = 'smem constant byte address 0x4 - core index']
  #allocation1 [shape = 'u32[72,128]{1,0:T(1,128)}', space=vmem, size = 0x9000, scoped, tag = 'internal scratch']
  #allocation2 [shape = 'f32[8,1]{1,0:T(8,128)}', space=vmem, size = 0x1000, scoped, tag = 'scratch operand']
  #allocation3 [shape = 'f32[8,1]{1,0:T(8,128)}', space=vmem, size = 0x1000, scoped, tag = 'scratch operand']
  %s0 = inlined_call_operand.vmem [shape: f32[2,8,5], index: 0, kind: input, shape index: {}]
  %s1 = inlined_call_operand.vmem [shape: f32[2,3,16], index: 1, kind: input, shape index: {}]
  %s2 = inlined_call_operand.hbm [shape: s8[2,8,16], index: 2, kind: output, shape index: {0}]
  %s3 = inlined_call_operand.hbm [shape: s32[2,1,8], index: 3, kind: output, shape index: {1}]
  %4 = xla_tuple %s2, %s3
  %s5 = sld [smem:[#allocation0]]
  $region61: #{tpu_custom_call.1} parent=0
    _
  %s7 = ssub.s32 1, %s5
  %s8 = scalar_select 0, %s7, %s5
  $region1: #{tpu_custom_call.1} parent=0
    #allocation4 [shape = 'u8[2048]{0}', space=vmem, size = 0x800, scoped, tag = 'output window, operand 0']
    #allocation5 [shape = 's32[2]{0}', space=sflag, size = 0x8, scoped, tag = 'scoped memory for tpu_custom_call.1']
    #allocation6 [shape = 'u8[1024]{0}', space=vmem, size = 0x400, scoped, tag = 'output window, operand 1']
    #allocation7 [shape = 's32[2]{0}', space=sflag, size = 0x8, scoped, tag = 'scoped memory for tpu_custom_call.1']
    %9 = vsyncpa [#allocation5], 0
    %s10 = scalar_lea.sflag [#allocation5], 1
    %11 = vsyncpa %s10, 0
    %12 = vsyncpa [#allocation7], 0
    %s13 = scalar_lea.sflag [#allocation7], 1
    %14 = vsyncpa %s13, 0
    loop: start=0, step=1, limit=4
    $region2: #{tpu_custom_call.1} parent=1 // loop_pre_header
      _
    $region3: #{tpu_custom_call.1} parent=1 // loop_header
      %s16 = sphi 0, %s20
      %p17 = scmp.ge.s32.totalorder %s16, 4
      %s23 = sphi 0, %s42
      %s24 = sphi 0, %s38
      %s25 = sphi 0, %s34
      %s26 = sphi 0, %s23
      %s27 = sphi 0, %s24
      %s28 = sphi 0, %s25
      %s29 = sphi 0, %s26
      %s30 = sphi 0, %s27
      %s31 = sphi 0, %s28
      %s47 = sphi 0, %s49
      %s50 = sphi 0, %s47
      %s51 = sphi 0, %s50
      %s67 = sphi 0, %s51
      %s75 = sphi 0, %s77
      %s78 = sphi 0, %s75
      %s79 = sphi 0, %s78
      %s95 = sphi 0, %s79
      %s105 = sphi 0, %s107
      %s108 = sphi 0, %s105
      %s109 = sphi 0, %s108
      %s125 = sphi 0, %s109
      %s133 = sphi 0, %s135
      %s136 = sphi 0, %s133
      %s137 = sphi 0, %s136
      %s153 = sphi 0, %s137
    $region4: #{tpu_custom_call.1} parent=1 // loop_header_branch
      %19 = sbr.rel (%p17) target = $region8
    $region5: #{tpu_custom_call.1} parent=1 // loop_body
      %s21 = ssub.s32 %s16, 1
      %s22 = ssub.s32 %s16, 2
      %s32 = sadd.s32 1, %s25
      %p33 = scmp.ge.s32.totalorder %s32, 1
      %s34 = scalar_select %p33, 0, %s32
      %s35 = sadd.s32 1, %s24
      %s36 = scalar_select %p33, %s35, %s24
      %p37 = scmp.ge.s32.totalorder %s36, 1
      %s38 = scalar_select %p37, 0, %s36
      %s39 = sadd.s32 1, %s23
      %s40 = scalar_select %p37, %s39, %s23
      %p41 = scmp.ge.s32.totalorder %s40, 2
      %s42 = scalar_select %p41, 0, %s40
      %s43 = ssub.s32 %s23, %s42
      %s44 = ssub.s32 %s24, %s38
      %s45 = sor.u32 %s43, %s44
      %p46 = scmp.eq.s32.totalorder %s45, 0
      %s48 = sadd.s32 %s47, 1
      %s49 = scalar_select %p46, %s47, %s48
      %p52 = pneg %p46
      %p53 = scmp.eq.s32.totalorder %s16, 1
      %p54 = por %p52, %p53
      %p55 = scmp.ne.s32.totalorder %s47, %s50
      %p56 = scmp.eq.s32.totalorder %s16, 0
      %p57 = por %p55, %p56
      %p58 = scmp.ne.s32.totalorder %s47, %s50
      %p59 = scmp.eq.s32.totalorder %s21, 1
      %p60 = por %p58, %p59
      %p61 = scmp.ne.s32.totalorder %s50, %s51
      %p62 = scmp.eq.s32.totalorder %s21, 0
      %p63 = por %p61, %p62
      %p64 = scmp.ne.s32.totalorder %s50, %s51
      %p65 = scmp.eq.s32.totalorder %s22, 1
      %p66 = por %p64, %p65
      %p68 = scmp.ne.s32.totalorder %s51, %s67
      %p69 = scmp.eq.s32.totalorder %s22, 0
      %p70 = por %p68, %p69
      %s71 = ssub.s32 %s23, %s42
      %s72 = ssub.s32 %s25, %s34
      %s73 = sor.u32 %s71, %s72
      %p74 = scmp.eq.s32.totalorder %s73, 0
      %s76 = sadd.s32 %s75, 1
      %s77 = scalar_select %p74, %s75, %s76
      %p80 = pneg %p74
      %p81 = scmp.eq.s32.totalorder %s16, 1
      %p82 = por %p80, %p81
      %p83 = scmp.ne.s32.totalorder %s75, %s78
      %p84 = scmp.eq.s32.totalorder %s16, 0
      %p85 = por %p83, %p84
      %p86 = scmp.ne.s32.totalorder %s75, %s78
      %p87 = scmp.eq.s32.totalorder %s21, 1
      %p88 = por %p86, %p87
      %p89 = scmp.ne.s32.totalorder %s78, %s79
      %p90 = scmp.eq.s32.totalorder %s21, 0
      %p91 = por %p89, %p90
      %p92 = scmp.ne.s32.totalorder %s78, %s79
      %p93 = scmp.eq.s32.totalorder %s22, 1
      %p94 = por %p92, %p93
      %p96 = scmp.ne.s32.totalorder %s79, %s95
      %p97 = scmp.eq.s32.totalorder %s22, 0
      %p98 = por %p96, %p97
      %s99 = ssub.s32 %s23, %s42
      %s100 = ssub.s32 %s24, %s38
      %s101 = sor.u32 %s99, %s100
      %s102 = ssub.s32 %s25, %s34
      %s103 = sor.u32 %s101, %s102
      %p104 = scmp.eq.s32.totalorder %s103, 0
      %s106 = sadd.s32 %s105, 1
      %s107 = scalar_select %p104, %s105, %s106
      %p110 = pneg %p104
      %p111 = scmp.eq.s32.totalorder %s16, 1
      %p112 = por %p110, %p111
      %p113 = scmp.ne.s32.totalorder %s105, %s108
      %p114 = scmp.eq.s32.totalorder %s16, 0
      %p115 = por %p113, %p114
      %p116 = scmp.ne.s32.totalorder %s105, %s108
      %p117 = scmp.eq.s32.totalorder %s21, 1
      %p118 = por %p116, %p117
      %p119 = scmp.ne.s32.totalorder %s108, %s109
      %p120 = scmp.eq.s32.totalorder %s21, 0
      %p121 = por %p119, %p120
      %p122 = scmp.ne.s32.totalorder %s108, %s109
      %p123 = scmp.eq.s32.totalorder %s22, 1
      %p124 = por %p122, %p123
      %p126 = scmp.ne.s32.totalorder %s109, %s125
      %p127 = scmp.eq.s32.totalorder %s22, 0
      %p128 = por %p126, %p127
      %s129 = ssub.s32 %s23, %s42
      %s130 = ssub.s32 %s24, %s38
      %s131 = sor.u32 %s129, %s130
      %p132 = scmp.eq.s32.totalorder %s131, 0
      %s134 = sadd.s32 %s133, 1
      %s135 = scalar_select %p132, %s133, %s134
      %p138 = pneg %p132
      %p139 = scmp.eq.s32.totalorder %s16, 1
      %p140 = por %p138, %p139
      %p141 = scmp.ne.s32.totalorder %s133, %s136
      %p142 = scmp.eq.s32.totalorder %s16, 0
      %p143 = por %p141, %p142
      %p144 = scmp.ne.s32.totalorder %s133, %s136
      %p145 = scmp.eq.s32.totalorder %s21, 1
      %p146 = por %p144, %p145
      %p147 = scmp.ne.s32.totalorder %s136, %s137
      %p148 = scmp.eq.s32.totalorder %s21, 0
      %p149 = por %p147, %p148
      %p150 = scmp.ne.s32.totalorder %s136, %s137
      %p151 = scmp.eq.s32.totalorder %s22, 1
      %p152 = por %p150, %p151
      %p154 = scmp.ne.s32.totalorder %s137, %s153
      %p155 = scmp.eq.s32.totalorder %s22, 0
      %p156 = por %p154, %p155
      %p157 = scmp.le.s32.totalorder 1, %s16
      %p158 = scmp.lt.s32.totalorder %s16, 3
      %p159 = pnand %p157, %p158
      %p160 = pneg %p159
      // Predicated region
      $region9: #{tpu_custom_call.1} parent=5 // pred_check
        _
      $region10: #{tpu_custom_call.1} parent=5 // pred_check_branch
        %162 = sbr.rel (%p159) target = $region12
      $region11: #{tpu_custom_call.1} parent=5 // pred_region
        %s163 = ssub.s32 %s16, 1
      $region12: #{tpu_custom_call.1} parent=5 // pred_fallthru
        _
      %p164 = scmp.lt.s32.totalorder %s16, 2
      // Predicated region
      $region13: #{tpu_custom_call.1} parent=5 // pred_check
        %p165 = pneg %p164
      $region14: #{tpu_custom_call.1} parent=5 // pred_check_branch
        %167 = sbr.rel (%p165) target = $region16
      $region15: #{tpu_custom_call.1} parent=5 // pred_region
        // Predicated region
        $region17: #{tpu_custom_call.1} parent=15 // pred_check
          %p168 = pneg %p57
        $region18: #{tpu_custom_call.1} parent=15 // pred_check_branch
          %170 = sbr.rel (%p168) target = $region20
        $region19: #{tpu_custom_call.1} parent=15 // pred_region
          %p171 = scmp.lt.s32.totalorder %s23, 1
          %s172 = scalar_select %p171, %s23, 1
          %p173 = scmp.lt.s32.totalorder %s24, 0
          %s174 = scalar_select %p173, %s24, 0
          %s175 = sadd.s32 %s174, %s172
          %s176 = smul.addr %s175, 8
          %s177 = scalar_lea.vmem %s0, %s176
        $region20: #{tpu_custom_call.1} parent=15 // pred_fallthru
          _
        // Predicated region
        $region21: #{tpu_custom_call.1} parent=15 // pred_check
          %p178 = pneg %p85
        $region22: #{tpu_custom_call.1} parent=15 // pred_check_branch
          %180 = sbr.rel (%p178) target = $region24
        $region23: #{tpu_custom_call.1} parent=15 // pred_region
          %p181 = scmp.lt.s32.totalorder %s23, 1
          %s182 = scalar_select %p181, %s23, 1
          %p183 = scmp.lt.s32.totalorder %s25, 0
          %s184 = scalar_select %p183, %s25, 0
          %s185 = sadd.s32 %s184, %s182
          %s186 = smul.addr %s185, 4
          %s187 = scalar_lea.vmem %s1, %s186
        $region24: #{tpu_custom_call.1} parent=15 // pred_fallthru
          _
      $region16: #{tpu_custom_call.1} parent=5 // pred_fallthru
        _
      %p188 = scmp.le.s32.totalorder 1, %s16
      %p189 = scmp.lt.s32.totalorder %s16, 3
      %p190 = pnand %p188, %p189
      %p191 = pneg %p190
      // Predicated region
      $region25: #{tpu_custom_call.1} parent=5 // pred_check
        _
      $region26: #{tpu_custom_call.1} parent=5 // pred_check_branch
        %193 = sbr.rel (%p190) target = $region28
      $region27: #{tpu_custom_call.1} parent=5 // pred_region
        %s194 = ssub.s32 %s16, 1
        %p195 = scmp.lt.s32.totalorder %s26, 1
        %s196 = scalar_select %p195, %s26, 1
        %p197 = scmp.lt.s32.totalorder %s27, 0
        %s198 = scalar_select %p197, %s27, 0
        %s199 = sadd.s32 %s198, %s196
        %s200 = smul.addr %s199, 8
        %s201 = scalar_lea.vmem %s0, %s200
        %p202 = pneg %p63
        %p203 = pneg %p60
        %p204 = scmp.lt.s32.totalorder %s26, 1
        %s205 = scalar_select %p204, %s26, 1
        %p206 = scmp.lt.s32.totalorder %s28, 0
        %s207 = scalar_select %p206, %s28, 0
        %s208 = sadd.s32 %s207, %s205
        %s209 = smul.addr %s208, 4
        %s210 = scalar_lea.vmem %s1, %s209
        %p211 = pneg %p91
        %p212 = pneg %p88
        %p213 = pneg %p121
        %p214 = pneg %p118
        %s215 = sand.u32 %s108, 1
        %s216 = scalar_lea.sflag [#allocation5], %s215
        %s217 = sand.u32 %s108, 1
        %s218 = smul.addr %s217, 2
        %s219 = scalar_lea.vmem [#allocation4], %s218
        %p220 = pneg %p149
        %p221 = pneg %p146
        %s222 = sand.u32 %s136, 1
        %s223 = scalar_lea.sflag [#allocation7], %s222
        %s224 = sand.u32 %s136, 1
        %s225 = scalar_lea.vmem [#allocation6], %s224
        %p226 = scmp.lt.s32.totalorder %s26, 1
        %s227 = scalar_select %p226, %s26, 1
        %p228 = scmp.lt.s32.totalorder %s27, 0
        %s229 = scalar_select %p228, %s27, 0
        %s230 = sadd.s32 %s229, %s227
        %s231 = smul.addr %s230, 8
        %s232 = scalar_lea.vmem %s0, %s231
        %p233 = scmp.lt.s32.totalorder %s26, 1
        %s234 = scalar_select %p233, %s26, 1
        %p235 = scmp.lt.s32.totalorder %s28, 0
        %s236 = scalar_select %p235, %s28, 0
        %s237 = sadd.s32 %s236, %s234
        %s238 = smul.addr %s237, 4
        %s239 = scalar_lea.vmem %s1, %s238
        %v240 = vld [vmem:[%s232] sm:$0xff]
        %v241 = vld [vmem:[%s239] sm:$0x7]
        %243 = vset.pattern.permute.xlu0 0
        %244 = vperm.xlu0 %243, %v240
        %v245 = vpop.permute.xlu0 %244
        %v247 = vperm.slane %v241, 0
        %v248 = vsub.f32 %v245, %v247
        %v249 = vmul.f32 %v248, %v248
        %250 = vset.pattern.permute.xlu0 1
        %251 = vperm.xlu0 %250, %v240
        %v252 = vpop.permute.xlu0 %251
        %v254 = vperm.slane %v241, 1
        %v255 = vsub.f32 %v252, %v254
        %v256 = vmul.f32 %v255, %v255
        %v257 = vadd.f32 %v249, %v256
        %258 = vset.pattern.permute.xlu0 2
        %259 = vperm.xlu0 %258, %v240
        %v260 = vpop.permute.xlu0 %259
        %v262 = vperm.slane %v241, 2
        %v263 = vsub.f32 %v260, %v262
        %v264 = vmul.f32 %v263, %v263
        %v265 = vadd.f32 %v257, %v264
        %vm266 = vcmp.le.f32.partialorder %v257, 2.0
        %267 = vset.pattern.permute.xlu0 3
        %268 = vperm.xlu0 %267, %v240
        %v269 = vpop.permute.xlu0 %268
        %vm271 = vcmp.le.f32.partialorder %v264, %v269
        %vm272 = vmand %vm266, %vm271
        %v273 = vsel %vm272, 1, 0
        %vm274 = vcmp.le.f32.partialorder %v257, 4.0
        %275 = vset.pattern.permute.xlu0 4
        %276 = vperm.xlu0 %275, %v240
        %v277 = vpop.permute.xlu0 %276
        %vm279 = vcmp.le.f32.partialorder %v264, %v277
        %vm280 = vmand %vm274, %vm279
        %v281 = vsel %vm280, 1, 0
        %v282 = vmul.u32 %v281, 2
        %v283 = vadd.s32 %v273, %v282
        %v284 = vpack.c.b16 %v283, %v283
        %v285 = vpack.c.b8 %v284, %v284
        %vm286 = vcmask 123904
        %287 = vst.msk [vmem:[%s219] sm:$0x3] %vm286, %v285
        %v288 = vlaneseq
        %v289 = vand.u32 %v288, 127
        %s290 = smul.u32 %s28, 16
        %v291 = vstv %s290
        %v292 = vadd.s32 %v289, %v291
        %v293 = vcvt.s32.f32 %v292
        %vm294 = vcmask 130048
        %v295 = vsel %vm294, %v265, inf
        %296 = vmin.xlane.f32.xlu0 %v295
        %v297 = vpop.xlane.xlu0 %296
        %vm298 = vcmp.eq.f32.partialorder %v265, %v297
        %v299 = vsel %vm298, %v293, 16.0
        %v300 = vsel %vm294, %v299, inf
        %301 = vmin.xlane.f32.xlu0 %v300
        %v302 = vpop.xlane.xlu0 %301
        %p303 = scmp.eq.s32.totalorder %s28, 0
        // Predicated region
        $region29: #{tpu_custom_call.1} parent=27 // pred_check
          %p304 = pneg %p303
        $region30: #{tpu_custom_call.1} parent=27 // pred_check_branch
          %306 = sbr.rel (%p304) target = $region32
        $region31: #{tpu_custom_call.1} parent=27 // pred_region
          %vm307 = vcmask 7168
          %308 = vst.msk [vmem:[#allocation2] sm:$0xff] %vm307, %v297
          %309 = vst.msk [vmem:[#allocation3] sm:$0xff] %vm307, %v302
        $region32: #{tpu_custom_call.1} parent=27 // pred_fallthru
          _
        %p310 = scmp.gt.s32.totalorder %s28, 0
        // Predicated region
        $region33: #{tpu_custom_call.1} parent=27 // pred_check
          %p311 = pneg %p310
        $region34: #{tpu_custom_call.1} parent=27 // pred_check_branch
          %313 = sbr.rel (%p311) target = $region36
        $region35: #{tpu_custom_call.1} parent=27 // pred_region
          %v314 = vld [vmem:[#allocation2] sm:$0xff]
          %vm315 = vcmp.lt.f32.partialorder %v297, %v314
          %v316 = vld [vmem:[#allocation3] sm:$0xff]
          %v317 = vsel %vm315, %v302, %v316
          %vm318 = vcmask 7168
          %319 = vst.msk [vmem:[#allocation3] sm:$0xff] %vm318, %v317
          %v320 = vld [vmem:[#allocation2] sm:$0xff]
          %v321 = vsel %vm315, %v297, %v320
          %322 = vst.msk [vmem:[#allocation2] sm:$0xff] %vm318, %v321
        $region36: #{tpu_custom_call.1} parent=27 // pred_fallthru
          _
        // Predicated region
        $region37: #{tpu_custom_call.1} parent=27 // pred_check
          %p323 = pneg %p303
        $region38: #{tpu_custom_call.1} parent=27 // pred_check_branch
          %325 = sbr.rel (%p323) target = $region40
        $region39: #{tpu_custom_call.1} parent=27 // pred_region
          %v326 = vld [vmem:[#allocation3] sm:$0xff]
          %v327 = vlaneseq
          %v328 = vshrl.u32 %v327, 7
          %vm329 = vcmp.eq.s32.totalorder %v328, %v289
          %331 = vset.pattern.permute.xlu0 0
          %332 = vperm.xlu0 %331, %v326
          %v333 = vpop.permute.xlu0 %332
          %v335 = vsel %vm329, %v333, 0.0
          %vm336 = vcmask 64512
          %v337 = vsel %vm336, %v335, 0.0
          %v338 = vrot.slane %v337, 4
          %v339 = vadd.f32 %v337, %v338
          %v340 = vrot.slane %v339, 2
          %v341 = vadd.f32 %v339, %v340
          %v342 = vrot.slane %v341, 1
          %v343 = vadd.f32 %v341, %v342
          %v344 = vcvt.f32.s32.to.zero.pseudo %v343
          %vm345 = vcmask 57344
          %346 = vst.msk [vmem:[%s225] sm:$0x1] %vm345, %v344
        $region40: #{tpu_custom_call.1} parent=27 // pred_fallthru
          _
        %s347 = sand.u32 %s108, 1
        %s348 = scalar_lea.sflag [#allocation5], %s347
        %s349 = sand.u32 %s108, 1
        %s350 = smul.addr %s349, 2
        %s351 = scalar_lea.vmem [#allocation4], %s350
        %s352 = sand.u32 %s136, 1
        %s353 = scalar_lea.sflag [#allocation7], %s352
        %s354 = sand.u32 %s136, 1
        %s355 = scalar_lea.vmem [#allocation6], %s354
        // Predicated region
        $region41: #{tpu_custom_call.1} parent=27 // pred_check
          %p356 = pneg %p118
        $region42: #{tpu_custom_call.1} parent=27 // pred_check_branch
          %358 = sbr.rel (%p356) target = $region44
        $region43: #{tpu_custom_call.1} parent=27 // pred_region
          %360 = vsyncadd %s348, 0
          %s361 = sadd.s32 %s28, %s27
          %s362 = sadd.s32 %s361, %s26
          %s363 = smul.addr %s362, 2
          %s364 = scalar_lea.hbm %s2, %s363
          %s366 = sshll.u32 %s351, 4
          %s367 = int_to_ptr.vmem [resolvable:$true] %s366
          %s368 = sshll.u32 %s364, 4
          %s369 = int_to_ptr.hbm [resolvable:$true] %s368
          %371 = dma.vmem_to_hbm [thread:$0]  %s367, 32, %s369, %s348
        $region44: #{tpu_custom_call.1} parent=27 // pred_fallthru
          _
        // Predicated region
        $region45: #{tpu_custom_call.1} parent=27 // pred_check
          %p372 = pneg %p146
        $region46: #{tpu_custom_call.1} parent=27 // pred_check_branch
          %374 = sbr.rel (%p372) target = $region48
        $region47: #{tpu_custom_call.1} parent=27 // pred_region
          %376 = vsyncadd %s353, 0
          %s377 = sadd.s32 %s27, %s26
          %s378 = scalar_lea.hbm %s3, %s377
          %s380 = sshll.u32 %s355, 4
          %s381 = int_to_ptr.vmem [resolvable:$true] %s380
          %s382 = sshll.u32 %s378, 4
          %s383 = int_to_ptr.hbm [resolvable:$true] %s382
          %385 = dma.vmem_to_hbm [thread:$0]  %s381, 16, %s383, %s353
        $region48: #{tpu_custom_call.1} parent=27 // pred_fallthru
          _
      $region28: #{tpu_custom_call.1} parent=5 // pred_fallthru
        _
      %p386 = scmp.le.s32.totalorder 2, %s16
      // Predicated region
      $region49: #{tpu_custom_call.1} parent=5 // pred_check
        %p387 = pneg %p386
      $region50: #{tpu_custom_call.1} parent=5 // pred_check_branch
        %389 = sbr.rel (%p387) target = $region52
      $region51: #{tpu_custom_call.1} parent=5 // pred_region
        %s390 = ssub.s32 %s16, 2
        // Predicated region
        $region53: #{tpu_custom_call.1} parent=51 // pred_check
          %p391 = pneg %p124
        $region54: #{tpu_custom_call.1} parent=51 // pred_check_branch
          %393 = sbr.rel (%p391) target = $region56
        $region55: #{tpu_custom_call.1} parent=51 // pred_region
          %s394 = sand.u32 %s109, 1
          %s395 = scalar_lea.sflag [#allocation5], %s394
          %s396 = sand.u32 %s109, 1
          %s397 = smul.addr %s396, 2
          %s398 = scalar_lea.vmem [#allocation4], %s397
          %400 = dma.done %s395, 32
        $region56: #{tpu_custom_call.1} parent=51 // pred_fallthru
          _
        // Predicated region
        $region57: #{tpu_custom_call.1} parent=51 // pred_check
          %p401 = pneg %p152
        $region58: #{tpu_custom_call.1} parent=51 // pred_check_branch
          %403 = sbr.rel (%p401) target = $region60
        $region59: #{tpu_custom_call.1} parent=51 // pred_region
          %s404 = sand.u32 %s137, 1
          %s405 = scalar_lea.sflag [#allocation7], %s404
          %s406 = sand.u32 %s137, 1
          %s407 = scalar_lea.vmem [#allocation6], %s406
          %409 = dma.done %s405, 16
        $region60: #{tpu_custom_call.1} parent=51 // pred_fallthru
          _
      $region52: #{tpu_custom_call.1} parent=5 // pred_fallthru
        _
    $region6: #{tpu_custom_call.1} parent=1 // loop_footer
      %s20 = sadd.s32 1, %s16
    $region7: #{tpu_custom_call.1} parent=1 // loop_footer_branch
      %15 = sbr.rel target = $region3
    $region8: #{tpu_custom_call.1} parent=1 // loop_exit
      _
    %410 = vsyncpa [#allocation5], 1
    %s411 = scalar_lea.sflag [#allocation5], 1
    %412 = vsyncpa %s411, 1
    %413 = vsyncpa [#allocation7], 1
    %s414 = scalar_lea.sflag [#allocation7], 1
    %415 = vsyncpa %s414, 1

</llo_original>
